<compile_context>
chip_gen: v7x
topology: tpu7x:2x2x1
jax: 0.10.0
libtpu: 0.0.40
codegen_flags: <defaults>
</compile_context>

<pallas_src>
import functools

import jax
import jax.numpy as jnp
from jax.experimental import pallas as pl
from jax.experimental.pallas import tpu as pltpu

NEG_SLOPE = 0.2      # PyG GATConv default negative_slope
MASK_VAL = -1e30     # masked (non-edge) attention logits

# ---- model hyper-params (small, consistent with the module) ----
NUM_NODES = 16
INPUT_DIM = 16
HIDDEN_DIM = 64      # hidden_dim in the PyTorch module
NUM_HEADS = 3
OUTPUT_DIM = 2


# --------------------------- Pallas kernel -----------------------------------

def gat_fused_kernel(x_ref, adj_ref,
                     w1_ref, a1_ref, b1_ref,
                     wfc_ref, bfc_ref,
                     w2_ref, a2_ref, b2_ref,
                     o_ref, *, num_heads, c1, c2):
    n = x_ref.shape[0]
    # Additive mask built ONCE, shared by both layers (no per-head selects).
    mask_bias = jnp.where(adj_ref[...] > 0.0, 0.0, MASK_VAL)          # [N, N]

    def stacked_attention(xw, a_cat_t_ref):
        """Masked-softmax attention for ALL heads at once -> [H, N, N]."""
        # All heads' dst/src logits in one MXU matmul against the concatenated
        # block-diagonal attention matrix (pre-transposed in the wrapper).
        scores = jnp.einsum('cm,nm->cn', a_cat_t_ref[...], xw,
                            preferred_element_type=jnp.float32)        # [2H, N]
        a_dst = scores[:num_heads]                                     # [H, N]
        a_src = scores[num_heads:]                                     # [H, N]
        # Head-stacked logits: one LeakyReLU/mask/max/exp/sum/recip pass/layer.
        e = a_dst[:, :, None] + a_src[:, None, :]                      # [H, N, N]
        e = jnp.where(e >= 0, e, NEG_SLOPE * e)                        # LeakyReLU
        e = e + mask_bias[None, :, :]
        e = e - jnp.max(e, axis=-1, keepdims=True)
        p = jnp.exp(e)
        inv = pl.reciprocal(jnp.sum(p, axis=-1, keepdims=True), approx=True)
        return p * inv                                                 # [H, N, N]

    # ---------------- gat1 (heads concatenated) ----------------
    xw1 = jnp.dot(x_ref[...], w1_ref[...],
                  preferred_element_type=jnp.float32)                  # [N, H*C1]
    attn1 = stacked_attention(xw1, a1_ref)                             # [H, N, N]
    heads1 = [jnp.dot(attn1[h], xw1[:, h * c1:(h + 1) * c1],
                      preferred_element_type=jnp.float32)
              for h in range(num_heads)]                               # H x [N, C1]
    h1 = jnp.concatenate(heads1, axis=1) + b1_ref[...]                 # [N, H*C1]

    # ---------------- fc + ReLU ----------------
    # TODO(synk): nn.Dropout(0.2) is stochastic; implemented as eval-mode identity.
    hf = jnp.maximum(
        jnp.dot(h1, wfc_ref[...], preferred_element_type=jnp.float32)
        + bfc_ref[...], 0.0)                                           # [N, C_fc]

    # ---------------- gat2 (mean over heads) ----------------
    xw2 = jnp.dot(hf, w2_ref[...], preferred_element_type=jnp.float32)  # [N, H*C2]
    attn2 = stacked_attention(xw2, a2_ref)                             # [H, N, N]
    # One matmul replaces the per-head accumulate loop: stack the H attention
    # matrices vertically and multiply by xw2; the per-head results are the
    # diagonal blocks of the [H*N, H*C2] product.
    attn2_flat = attn2.reshape(num_heads * n, n)                       # [H*N, N]
    z2 = jnp.dot(attn2_flat, xw2, preferred_element_type=jnp.float32)  # [H*N, H*C2]
    acc = z2[0:n, 0:c2]
    for h in range(1, num_heads):
        acc = acc + z2[h * n:(h + 1) * n, h * c2:(h + 1) * c2]
    y = acc * (1.0 / num_heads) + b2_ref[...]                          # [N, C2]

    # ---------------- final softmax over classes (dim=1) ----------------
    # Exact division so output rows sum to 1 at f32 precision.
    y = y - jnp.max(y, axis=1, keepdims=True)
    ey = jnp.exp(y)
    o_ref[...] = ey / jnp.sum(ey, axis=1, keepdims=True)


# --------------------------- wrapper ------------------------------------------

def _att_blockdiag(att):
    # [H, C] -> [H*C, H] block-diagonal: column h holds att[h] in rows h*C:(h+1)*C.
    H, C = att.shape
    eye = jnp.eye(H, dtype=att.dtype)
    return (att[:, :, None] * eye[:, None, :]).reshape(H * C, H)


def _att_cat_t(att_dst, att_src):
    # [2H, H*C]: rows 0..H-1 -> dst block-diag^T, rows H..2H-1 -> src block-diag^T.
    return jnp.concatenate(
        [_att_blockdiag(att_dst), _att_blockdiag(att_src)], axis=1).T


def gat_forward(params, x, adj):
    n = x.shape[0]
    a1_cat_t = _att_cat_t(params["ad1"], params["as1"])   # [2H, H*C1]
    a2_cat_t = _att_cat_t(params["ad2"], params["as2"])   # [2H, H*C2]

    kernel = functools.partial(gat_fused_kernel, num_heads=NUM_HEADS,
                               c1=HIDDEN_DIM, c2=OUTPUT_DIM)
    vmem = pl.BlockSpec(memory_space=pltpu.MemorySpace.VMEM)
    return pl.pallas_call(
        kernel,
        out_shape=jax.ShapeDtypeStruct((n, OUTPUT_DIM), jnp.float32),
        in_specs=[vmem] * 10,
        out_specs=vmem,
    )(x, adj,
      params["W1"], a1_cat_t, params["b1"],
      params["Wfc"], params["bfc"],
      params["W2"], a2_cat_t, params["b2"])


# --------------------------- setup / main -------------------------------------

def init_params(key):
    ks = jax.random.split(key, 10)
    s = 0.1
    return {
        # gat1: in=INPUT_DIM, out=HIDDEN_DIM, heads=NUM_HEADS, concat=True
        "W1":  s * jax.random.normal(ks[0], (INPUT_DIM, NUM_HEADS * HIDDEN_DIM), jnp.float32),
        "as1": s * jax.random.normal(ks[1], (NUM_HEADS, HIDDEN_DIM), jnp.float32),
        "ad1": s * jax.random.normal(ks[2], (NUM_HEADS, HIDDEN_DIM), jnp.float32),
        "b1":  s * jax.random.normal(ks[3], (1, NUM_HEADS * HIDDEN_DIM), jnp.float32),
        # fc: Linear(hidden*heads -> hidden)
        "Wfc": s * jax.random.normal(ks[4], (NUM_HEADS * HIDDEN_DIM, HIDDEN_DIM), jnp.float32),
        "bfc": s * jax.random.normal(ks[5], (1, HIDDEN_DIM), jnp.float32),
        # gat2: in=HIDDEN_DIM, out=OUTPUT_DIM, heads=NUM_HEADS, concat=False
        "W2":  s * jax.random.normal(ks[6], (HIDDEN_DIM, NUM_HEADS * OUTPUT_DIM), jnp.float32),
        "as2": s * jax.random.normal(ks[7], (NUM_HEADS, OUTPUT_DIM), jnp.float32),
        "ad2": s * jax.random.normal(ks[8], (NUM_HEADS, OUTPUT_DIM), jnp.float32),
        "b2":  s * jax.random.normal(ks[9], (1, OUTPUT_DIM), jnp.float32),
    }


def edge_index_to_adj(edge_index, num_nodes):
    # edge_index: [2, E] with row 0 = source, row 1 = target (PyG convention).
    src, dst = edge_index[0], edge_index[1]
    adj = jnp.zeros((num_nodes, num_nodes), jnp.float32)
    adj = adj.at[dst, src].set(1.0)
    diag = jnp.arange(num_nodes)
    adj = adj.at[diag, diag].set(1.0)      # add_self_loops=True (GATConv default)
    return adj


if __name__ == "__main__":
    key = jax.random.PRNGKey(0)
    kx, ke1, ke2, kp = jax.random.split(key, 4)

    # node features [N, input_dim]
    x = jax.random.normal(kx, (NUM_NODES, INPUT_DIM), jnp.float32)

    # random edge_index [2, E] -> dense binary adjacency with self-loops
    E = 40
    src = jax.random.randint(ke1, (E,), 0, NUM_NODES)
    dst = jax.random.randint(ke2, (E,), 0, NUM_NODES)
    edge_index = jnp.stack([src, dst], axis=0)
    adj = edge_index_to_adj(edge_index, NUM_NODES)

    params = init_params(kp)

    out = jax.jit(gat_forward)(params, x, adj)
    out = jax.block_until_ready(out)

    assert out.shape == (NUM_NODES, OUTPUT_DIM)
    assert bool(jnp.all(jnp.isfinite(out)))
    # rows of the final softmax must sum to 1
    assert bool(jnp.all(jnp.abs(jnp.sum(out, axis=1) - 1.0) < 1e-5))

    print("KERNEL_OK")
</pallas_src>

<mosaic_0001>
module attributes {stable_mosaic.version = 11 : i64} {
  func.func @gat_fused_kernel(%arg0: memref<16x16xf32, #tpu.memory_space<vmem>>, %arg1: memref<16x16xf32, #tpu.memory_space<vmem>>, %arg2: memref<16x192xf32, #tpu.memory_space<vmem>>, %arg3: memref<6x192xf32, #tpu.memory_space<vmem>>, %arg4: memref<1x192xf32, #tpu.memory_space<vmem>>, %arg5: memref<192x64xf32, #tpu.memory_space<vmem>>, %arg6: memref<1x64xf32, #tpu.memory_space<vmem>>, %arg7: memref<64x6xf32, #tpu.memory_space<vmem>>, %arg8: memref<6x6xf32, #tpu.memory_space<vmem>>, %arg9: memref<1x2xf32, #tpu.memory_space<vmem>>, %arg10: memref<16x2xf32, #tpu.memory_space<vmem>>) attributes {dimension_semantics = [], scalar_prefetch = 0 : i64, scratch_operands = 0 : i64, tpu.core_type = #tpu.core_type<tc>} {
    %c0 = arith.constant 0 : index
    %c0_0 = arith.constant 0 : index
    %0 = vector.load %arg1[%c0, %c0_0] : memref<16x16xf32, #tpu.memory_space<vmem>>, vector<16x16xf32>
    %cst = arith.constant 0.000000e+00 : f32
    %1 = vector.broadcast %cst : f32 to vector<16x16xf32>
    %2 = arith.cmpf ogt, %0, %1 : vector<16x16xf32>
    %cst_1 = arith.constant 0.000000e+00 : f32
    %cst_2 = arith.constant -1.000000e+30 : f32
    %3 = vector.broadcast %cst_1 : f32 to vector<16x16xf32>
    %4 = vector.broadcast %cst_2 : f32 to vector<16x16xf32>
    %5 = arith.select %2, %3, %4 : vector<16x16xi1>, vector<16x16xf32>
    %c0_3 = arith.constant 0 : index
    %c0_4 = arith.constant 0 : index
    %6 = vector.load %arg0[%c0_3, %c0_4] : memref<16x16xf32, #tpu.memory_space<vmem>>, vector<16x16xf32>
    %c0_5 = arith.constant 0 : index
    %c0_6 = arith.constant 0 : index
    %7 = vector.load %arg2[%c0_5, %c0_6] : memref<16x192xf32, #tpu.memory_space<vmem>>, vector<16x192xf32>
    %cst_7 = arith.constant dense<0.000000e+00> : vector<16x192xf32>
    %8 = tpu.matmul %6, %7, %cst_7 {dimension_numbers = #tpu.dot_dimension_numbers<[1], [0], [0], [1], [0, 0, 1, 1], [], []>} : vector<16x16xf32>, vector<16x192xf32>, vector<16x192xf32> -> vector<16x192xf32>
    %c0_8 = arith.constant 0 : index
    %c0_9 = arith.constant 0 : index
    %9 = vector.load %arg3[%c0_8, %c0_9] : memref<6x192xf32, #tpu.memory_space<vmem>>, vector<6x192xf32>
    "tpu.trace_start"() <{level = 10 : i32, message = "cm,nm->cn"}> : () -> ()
    %cst_10 = arith.constant dense<0.000000e+00> : vector<6x16xf32>
    %10 = tpu.matmul %9, %8, %cst_10 {dimension_numbers = #tpu.dot_dimension_numbers<[1], [1], [0], [0], [0, 0, 1, 0], [], []>} : vector<6x192xf32>, vector<16x192xf32>, vector<6x16xf32> -> vector<6x16xf32>
    "tpu.trace_stop"() : () -> ()
    %11 = vector.extract_strided_slice %10 {offsets = [0, 0], sizes = [3, 16], strides = [1, 1]} : vector<6x16xf32> to vector<3x16xf32>
    %12 = vector.extract_strided_slice %10 {offsets = [3, 0], sizes = [3, 16], strides = [1, 1]} : vector<6x16xf32> to vector<3x16xf32>
    %13 = vector.shape_cast %11 : vector<3x16xf32> to vector<3x16x1xf32>
    %14 = vector.shape_cast %12 : vector<3x16xf32> to vector<3x1x16xf32>
    %15 = vector.broadcast %13 : vector<3x16x1xf32> to vector<3x16x16xf32>
    %16 = vector.broadcast %14 : vector<3x1x16xf32> to vector<3x16x16xf32>
    %17 = arith.addf %15, %16 : vector<3x16x16xf32>
    %cst_11 = arith.constant 0.000000e+00 : f32
    %18 = vector.broadcast %cst_11 : f32 to vector<3x16x16xf32>
    %19 = arith.cmpf oge, %17, %18 : vector<3x16x16xf32>
    %cst_12 = arith.constant 2.000000e-01 : f32
    %20 = vector.broadcast %cst_12 : f32 to vector<3x16x16xf32>
    %21 = arith.mulf %20, %17 : vector<3x16x16xf32>
    %22 = arith.select %19, %17, %21 : vector<3x16x16xi1>, vector<3x16x16xf32>
    %23 = vector.shape_cast %5 : vector<16x16xf32> to vector<1x16x16xf32>
    %24 = vector.broadcast %23 : vector<1x16x16xf32> to vector<3x16x16xf32>
    %25 = arith.addf %22, %24 : vector<3x16x16xf32>
    %cst_13 = arith.constant dense<0xFF800000> : vector<3x16xf32>
    %26 = vector.multi_reduction <maximumf>, %25, %cst_13 [2] : vector<3x16x16xf32> to vector<3x16xf32>
    %27 = vector.shape_cast %26 : vector<3x16xf32> to vector<3x16x1xf32>
    %28 = vector.broadcast %27 : vector<3x16x1xf32> to vector<3x16x16xf32>
    %29 = arith.subf %25, %28 : vector<3x16x16xf32>
    %30 = math.exp %29 : vector<3x16x16xf32>
    %cst_14 = arith.constant dense<0.000000e+00> : vector<3x16xf32>
    %31 = vector.multi_reduction <add>, %30, %cst_14 [2] : vector<3x16x16xf32> to vector<3x16xf32>
    %32 = vector.shape_cast %31 : vector<3x16xf32> to vector<3x16x1xf32>
    %33 = tpu.reciprocal %32 {approx = true} : vector<3x16x1xf32> -> vector<3x16x1xf32>
    %34 = vector.broadcast %33 : vector<3x16x1xf32> to vector<3x16x16xf32>
    %35 = arith.mulf %30, %34 : vector<3x16x16xf32>
    %36 = vector.extract_strided_slice %35 {offsets = [0, 0, 0], sizes = [1, 16, 16], strides = [1, 1, 1]} : vector<3x16x16xf32> to vector<1x16x16xf32>
    %37 = vector.shape_cast %36 : vector<1x16x16xf32> to vector<16x16xf32>
    %38 = vector.extract_strided_slice %8 {offsets = [0, 0], sizes = [16, 64], strides = [1, 1]} : vector<16x192xf32> to vector<16x64xf32>
    %cst_15 = arith.constant dense<0.000000e+00> : vector<16x64xf32>
    %39 = tpu.matmul %37, %38, %cst_15 {dimension_numbers = #tpu.dot_dimension_numbers<[1], [0], [0], [1], [0, 0, 1, 1], [], []>} : vector<16x16xf32>, vector<16x64xf32>, vector<16x64xf32> -> vector<16x64xf32>
    %40 = vector.extract_strided_slice %35 {offsets = [1, 0, 0], sizes = [1, 16, 16], strides = [1, 1, 1]} : vector<3x16x16xf32> to vector<1x16x16xf32>
    %41 = vector.shape_cast %40 : vector<1x16x16xf32> to vector<16x16xf32>
    %42 = vector.extract_strided_slice %8 {offsets = [0, 64], sizes = [16, 64], strides = [1, 1]} : vector<16x192xf32> to vector<16x64xf32>
    %cst_16 = arith.constant dense<0.000000e+00> : vector<16x64xf32>
    %43 = tpu.matmul %41, %42, %cst_16 {dimension_numbers = #tpu.dot_dimension_numbers<[1], [0], [0], [1], [0, 0, 1, 1], [], []>} : vector<16x16xf32>, vector<16x64xf32>, vector<16x64xf32> -> vector<16x64xf32>
    %44 = vector.extract_strided_slice %35 {offsets = [2, 0, 0], sizes = [1, 16, 16], strides = [1, 1, 1]} : vector<3x16x16xf32> to vector<1x16x16xf32>
    %45 = vector.shape_cast %44 : vector<1x16x16xf32> to vector<16x16xf32>
    %46 = vector.extract_strided_slice %8 {offsets = [0, 128], sizes = [16, 64], strides = [1, 1]} : vector<16x192xf32> to vector<16x64xf32>
    %cst_17 = arith.constant dense<0.000000e+00> : vector<16x64xf32>
    %47 = tpu.matmul %45, %46, %cst_17 {dimension_numbers = #tpu.dot_dimension_numbers<[1], [0], [0], [1], [0, 0, 1, 1], [], []>} : vector<16x16xf32>, vector<16x64xf32>, vector<16x64xf32> -> vector<16x64xf32>
    %48 = tpu.concatenate %39, %43, %47 in 1 : vector<16x64xf32>, vector<16x64xf32>, vector<16x64xf32> -> vector<16x192xf32>
    %c0_18 = arith.constant 0 : index
    %c0_19 = arith.constant 0 : index
    %49 = vector.load %arg4[%c0_18, %c0_19] : memref<1x192xf32, #tpu.memory_space<vmem>>, vector<1x192xf32>
    %50 = vector.broadcast %49 : vector<1x192xf32> to vector<16x192xf32>
    %51 = arith.addf %48, %50 : vector<16x192xf32>
    %c0_20 = arith.constant 0 : index
    %c0_21 = arith.constant 0 : index
    %52 = vector.load %arg5[%c0_20, %c0_21] : memref<192x64xf32, #tpu.memory_space<vmem>>, vector<192x64xf32>
    %cst_22 = arith.constant dense<0.000000e+00> : vector<16x64xf32>
    %53 = tpu.matmul %51, %52, %cst_22 {dimension_numbers = #tpu.dot_dimension_numbers<[1], [0], [0], [1], [0, 0, 1, 1], [], []>} : vector<16x192xf32>, vector<192x64xf32>, vector<16x64xf32> -> vector<16x64xf32>
    %c0_23 = arith.constant 0 : index
    %c0_24 = arith.constant 0 : index
    %54 = vector.load %arg6[%c0_23, %c0_24] : memref<1x64xf32, #tpu.memory_space<vmem>>, vector<1x64xf32>
    %55 = vector.broadcast %54 : vector<1x64xf32> to vector<16x64xf32>
    %56 = arith.addf %53, %55 : vector<16x64xf32>
    %cst_25 = arith.constant 0.000000e+00 : f32
    %57 = vector.broadcast %cst_25 : f32 to vector<16x64xf32>
    %58 = arith.maximumf %56, %57 : vector<16x64xf32>
    %c0_26 = arith.constant 0 : index
    %c0_27 = arith.constant 0 : index
    %59 = vector.load %arg7[%c0_26, %c0_27] : memref<64x6xf32, #tpu.memory_space<vmem>>, vector<64x6xf32>
    %cst_28 = arith.constant dense<0.000000e+00> : vector<16x6xf32>
    %60 = tpu.matmul %58, %59, %cst_28 {dimension_numbers = #tpu.dot_dimension_numbers<[1], [0], [0], [1], [0, 0, 1, 1], [], []>} : vector<16x64xf32>, vector<64x6xf32>, vector<16x6xf32> -> vector<16x6xf32>
    %c0_29 = arith.constant 0 : index
    %c0_30 = arith.constant 0 : index
    %61 = vector.load %arg8[%c0_29, %c0_30] : memref<6x6xf32, #tpu.memory_space<vmem>>, vector<6x6xf32>
    "tpu.trace_start"() <{level = 10 : i32, message = "cm,nm->cn"}> : () -> ()
    %cst_31 = arith.constant dense<0.000000e+00> : vector<6x16xf32>
    %62 = tpu.matmul %61, %60, %cst_31 {dimension_numbers = #tpu.dot_dimension_numbers<[1], [1], [0], [0], [0, 0, 1, 0], [], []>} : vector<6x6xf32>, vector<16x6xf32>, vector<6x16xf32> -> vector<6x16xf32>
    "tpu.trace_stop"() : () -> ()
    %63 = vector.extract_strided_slice %62 {offsets = [0, 0], sizes = [3, 16], strides = [1, 1]} : vector<6x16xf32> to vector<3x16xf32>
    %64 = vector.extract_strided_slice %62 {offsets = [3, 0], sizes = [3, 16], strides = [1, 1]} : vector<6x16xf32> to vector<3x16xf32>
    %65 = vector.shape_cast %63 : vector<3x16xf32> to vector<3x16x1xf32>
    %66 = vector.shape_cast %64 : vector<3x16xf32> to vector<3x1x16xf32>
    %67 = vector.broadcast %65 : vector<3x16x1xf32> to vector<3x16x16xf32>
    %68 = vector.broadcast %66 : vector<3x1x16xf32> to vector<3x16x16xf32>
    %69 = arith.addf %67, %68 : vector<3x16x16xf32>
    %cst_32 = arith.constant 0.000000e+00 : f32
    %70 = vector.broadcast %cst_32 : f32 to vector<3x16x16xf32>
    %71 = arith.cmpf oge, %69, %70 : vector<3x16x16xf32>
    %cst_33 = arith.constant 2.000000e-01 : f32
    %72 = vector.broadcast %cst_33 : f32 to vector<3x16x16xf32>
    %73 = arith.mulf %72, %69 : vector<3x16x16xf32>
    %74 = arith.select %71, %69, %73 : vector<3x16x16xi1>, vector<3x16x16xf32>
    %75 = vector.shape_cast %5 : vector<16x16xf32> to vector<1x16x16xf32>
    %76 = vector.broadcast %75 : vector<1x16x16xf32> to vector<3x16x16xf32>
    %77 = arith.addf %74, %76 : vector<3x16x16xf32>
    %cst_34 = arith.constant dense<0xFF800000> : vector<3x16xf32>
    %78 = vector.multi_reduction <maximumf>, %77, %cst_34 [2] : vector<3x16x16xf32> to vector<3x16xf32>
    %79 = vector.shape_cast %78 : vector<3x16xf32> to vector<3x16x1xf32>
    %80 = vector.broadcast %79 : vector<3x16x1xf32> to vector<3x16x16xf32>
    %81 = arith.subf %77, %80 : vector<3x16x16xf32>
    %82 = math.exp %81 : vector<3x16x16xf32>
    %cst_35 = arith.constant dense<0.000000e+00> : vector<3x16xf32>
    %83 = vector.multi_reduction <add>, %82, %cst_35 [2] : vector<3x16x16xf32> to vector<3x16xf32>
    %84 = vector.shape_cast %83 : vector<3x16xf32> to vector<3x16x1xf32>
    %85 = tpu.reciprocal %84 {approx = true} : vector<3x16x1xf32> -> vector<3x16x1xf32>
    %86 = vector.broadcast %85 : vector<3x16x1xf32> to vector<3x16x16xf32>
    %87 = arith.mulf %82, %86 : vector<3x16x16xf32>
    %88 = vector.shape_cast %87 : vector<3x16x16xf32> to vector<48x16xf32>
    %cst_36 = arith.constant dense<0.000000e+00> : vector<48x6xf32>
    %89 = tpu.matmul %88, %60, %cst_36 {dimension_numbers = #tpu.dot_dimension_numbers<[1], [0], [0], [1], [0, 0, 1, 1], [], []>} : vector<48x16xf32>, vector<16x6xf32>, vector<48x6xf32> -> vector<48x6xf32>
    %90 = vector.extract_strided_slice %89 {offsets = [0, 0], sizes = [16, 2], strides = [1, 1]} : vector<48x6xf32> to vector<16x2xf32>
    %91 = vector.extract_strided_slice %89 {offsets = [16, 2], sizes = [16, 2], strides = [1, 1]} : vector<48x6xf32> to vector<16x2xf32>
    %92 = arith.addf %90, %91 : vector<16x2xf32>
    %93 = vector.extract_strided_slice %89 {offsets = [32, 4], sizes = [16, 2], strides = [1, 1]} : vector<48x6xf32> to vector<16x2xf32>
    %94 = arith.addf %92, %93 : vector<16x2xf32>
    %cst_37 = arith.constant 0.333333343 : f32
    %95 = vector.broadcast %cst_37 : f32 to vector<16x2xf32>
    %96 = arith.mulf %94, %95 : vector<16x2xf32>
    %c0_38 = arith.constant 0 : index
    %c0_39 = arith.constant 0 : index
    %97 = vector.load %arg9[%c0_38, %c0_39] : memref<1x2xf32, #tpu.memory_space<vmem>>, vector<1x2xf32>
    %98 = vector.broadcast %97 : vector<1x2xf32> to vector<16x2xf32>
    %99 = arith.addf %96, %98 : vector<16x2xf32>
    %cst_40 = arith.constant dense<0xFF800000> : vector<16xf32>
    %100 = vector.multi_reduction <maximumf>, %99, %cst_40 [1] : vector<16x2xf32> to vector<16xf32>
    %101 = vector.shape_cast %100 : vector<16xf32> to vector<16x1xf32>
    %102 = vector.broadcast %101 : vector<16x1xf32> to vector<16x2xf32>
    %103 = arith.subf %99, %102 : vector<16x2xf32>
    %104 = math.exp %103 : vector<16x2xf32>
    %cst_41 = arith.constant dense<0.000000e+00> : vector<16xf32>
    %105 = vector.multi_reduction <add>, %104, %cst_41 [1] : vector<16x2xf32> to vector<16xf32>
    %106 = vector.shape_cast %105 : vector<16xf32> to vector<16x1xf32>
    %107 = vector.broadcast %106 : vector<16x1xf32> to vector<16x2xf32>
    %108 = arith.divf %104, %107 : vector<16x2xf32>
    %c0_42 = arith.constant 0 : index
    %c0_43 = arith.constant 0 : index
    %109 = vector.load %arg10[%c0_42, %c0_43] : memref<16x2xf32, #tpu.memory_space<vmem>>, vector<16x2xf32>
    tpu.vector_store %arg10[%c0_42, %c0_43], %108 {strides = array<i32>} : memref<16x2xf32, #tpu.memory_space<vmem>>, vector<16x2xf32>,
    return
  }
}

</mosaic_0001>

<llo_original>
// kernel: gat_forward.1
$region0: #{gat_forward.1}
  #allocation0 [shape = 'u32[]', space=smem, size = 0x4, offset = 0x4, fixed_abs, tag = 'smem constant byte address 0x4 - core index']
  #allocation1 [shape = 'u32[144,128]{1,0:T(1,128)}', space=vmem, size = 0x12000, scoped, tag = 'internal scratch']
  %s0 = inlined_call_operand.vmem [shape: f32[16,16], index: 0, kind: input, shape index: {}]
  %s1 = inlined_call_operand.vmem [shape: f32[16,16], index: 1, kind: input, shape index: {}]
  %s2 = inlined_call_operand.vmem [shape: f32[16,192], index: 2, kind: input, shape index: {}]
  %s3 = inlined_call_operand.vmem [shape: f32[6,192], index: 3, kind: input, shape index: {}]
  %s4 = inlined_call_operand.vmem [shape: f32[1,192], index: 4, kind: input, shape index: {}]
  %s5 = inlined_call_operand.vmem [shape: f32[192,64], index: 5, kind: input, shape index: {}]
  %s6 = inlined_call_operand.vmem [shape: f32[1,64], index: 6, kind: input, shape index: {}]
  %s7 = inlined_call_operand.vmem [shape: f32[64,6], index: 7, kind: input, shape index: {}]
  %s8 = inlined_call_operand.vmem [shape: f32[6,6], index: 8, kind: input, shape index: {}]
  %s9 = inlined_call_operand.vmem [shape: f32[1,2], index: 9, kind: input, shape index: {}]
  %s10 = inlined_call_operand.vmem [shape: f32[16,2], index: 10, kind: output, shape index: {}]
  %s11 = sld [smem:[#allocation0]]
  $region50: #{gat_forward.1} parent=0
    _
  %s13 = ssub.s32 1, %s11
  %s14 = scalar_select 0, %s13, %s11
  // Predicated region
  $region2: #{gat_forward.1} parent=0 // pred_check
    _
  $region3: #{gat_forward.1} parent=0 // pred_check_branch
    %16 = sbr.rel (0) target = $region5
  $region4: #{gat_forward.1} parent=0 // pred_region
    _
  $region5: #{gat_forward.1} parent=0 // pred_fallthru
    _
  // Predicated region
  $region6: #{gat_forward.1} parent=0 // pred_check
    _
  $region7: #{gat_forward.1} parent=0 // pred_check_branch
    %18 = sbr.rel (0) target = $region9
  $region8: #{gat_forward.1} parent=0 // pred_region
    _
  $region9: #{gat_forward.1} parent=0 // pred_fallthru
    _
  // Predicated region
  $region10: #{gat_forward.1} parent=0 // pred_check
    _
  $region11: #{gat_forward.1} parent=0 // pred_check_branch
    %20 = sbr.rel (0) target = $region13
  $region12: #{gat_forward.1} parent=0 // pred_region
    _
  $region13: #{gat_forward.1} parent=0 // pred_fallthru
    _
  // Predicated region
  $region14: #{gat_forward.1} parent=0 // pred_check
    _
  $region15: #{gat_forward.1} parent=0 // pred_check_branch
    %22 = sbr.rel (0) target = $region17
  $region16: #{gat_forward.1} parent=0 // pred_region
    _
  $region17: #{gat_forward.1} parent=0 // pred_fallthru
    _
  // Predicated region
  $region18: #{gat_forward.1} parent=0 // pred_check
    _
  $region19: #{gat_forward.1} parent=0 // pred_check_branch
    %24 = sbr.rel (0) target = $region21
  $region20: #{gat_forward.1} parent=0 // pred_region
    _
  $region21: #{gat_forward.1} parent=0 // pred_fallthru
    _
  // Predicated region
  $region22: #{gat_forward.1} parent=0 // pred_check
    _
  $region23: #{gat_forward.1} parent=0 // pred_check_branch
    %26 = sbr.rel (0) target = $region25
  $region24: #{gat_forward.1} parent=0 // pred_region
    _
  $region25: #{gat_forward.1} parent=0 // pred_fallthru
    _
  // Predicated region
  $region26: #{gat_forward.1} parent=0 // pred_check
    _
  $region27: #{gat_forward.1} parent=0 // pred_check_branch
    %28 = sbr.rel (0) target = $region29
  $region28: #{gat_forward.1} parent=0 // pred_region
    _
  $region29: #{gat_forward.1} parent=0 // pred_fallthru
    _
  // Predicated region
  $region30: #{gat_forward.1} parent=0 // pred_check
    _
  $region31: #{gat_forward.1} parent=0 // pred_check_branch
    %30 = sbr.rel (0) target = $region33
  $region32: #{gat_forward.1} parent=0 // pred_region
    _
  $region33: #{gat_forward.1} parent=0 // pred_fallthru
    _
  // Predicated region
  $region34: #{gat_forward.1} parent=0 // pred_check
    _
  $region35: #{gat_forward.1} parent=0 // pred_check_branch
    %32 = sbr.rel (0) target = $region37
  $region36: #{gat_forward.1} parent=0 // pred_region
    _
  $region37: #{gat_forward.1} parent=0 // pred_fallthru
    _
  // Predicated region
  $region38: #{gat_forward.1} parent=0 // pred_check
    _
  $region39: #{gat_forward.1} parent=0 // pred_check_branch
    %34 = sbr.rel (0) target = $region41
  $region40: #{gat_forward.1} parent=0 // pred_region
    _
  $region41: #{gat_forward.1} parent=0 // pred_fallthru
    _
  %v35 = vld [vmem:[%s1] sm:$0xff]
  %v36 = vld [vmem:[%s1 + $0x8] sm:$0xff]
  %vm37 = vcmp.gt.f32.partialorder %v35, 0.0
  %vm38 = vcmp.gt.f32.partialorder %v36, 0.0
  %v39 = vsel %vm37, 0.0, -1e+30
  %v40 = vsel %vm38, 0.0, -1e+30
  %v41 = vld [vmem:[%s0] sm:$0xff]
  %v42 = vld [vmem:[%s0 + $0x8] sm:$0xff]
  %v43 = vld [vmem:[%s2] sm:$0xff]
  %v44 = vld [vmem:[%s2 + $0x8] sm:$0xff]
  %v45 = vld [vmem:[%s2 + $0x10] sm:$0xff]
  %v46 = vld [vmem:[%s2 + $0x18] sm:$0xff]
  %vm47 = vcmask 130048
  %v49 = vsel %vm47, %v41, 0
  %v52 = vsel %vm47, %v42, 0
  %54 = vmatprep.subr.mxu0 %v44
  %55 = vmatpush1.msra.mxu0 %v43
  %56 = vmatprep.subr.mxu0 %v46
  %57 = vmatpush1.msra.mxu0 %v45
  %58 = vmatprep.subr.mxu0 0.0
  %59 = vmatpush1.msra.mxu0 0.0
  %60 = vmatprep.subr.mxu0 0.0
  %61 = vmatpush1.msra.mxu0 0.0
  %62 = vmatprep.subr.mxu0 0.0
  %63 = vmatpush1.msra.mxu0 0.0
  %64 = vmatprep.subr.mxu0 0.0
  %65 = vmatpush1.msra.mxu0 0.0
  %66 = vmatprep.subr.mxu0 0.0
  %67 = vmatpush1.msra.mxu0 0.0
  %68 = vmatprep.subr.mxu0 0.0
  %69 = vmatpush1.msra.mxu0 0.0
  %70 = vmatprep.subr.mxu0 0.0
  %71 = vmatpush1.msra.mxu0 0.0
  %72 = vmatprep.subr.mxu0 0.0
  %73 = vmatpush1.msra.mxu0 0.0
  %74 = vmatprep.subr.mxu0 0.0
  %75 = vmatpush1.msra.mxu0 0.0
  %76 = vmatprep.subr.mxu0 0.0
  %77 = vmatpush1.msra.mxu0 0.0
  %78 = vmatprep.subr.mxu0 0.0
  %79 = vmatpush1.msra.mxu0 0.0
  %80 = vmatprep.subr.mxu0 0.0
  %81 = vmatpush1.msra.mxu0 0.0
  %82 = vmatprep.subr.mxu0 0.0
  %83 = vmatpush1.msra.mxu0 0.0
  %84 = vmatprep.subr.mxu0 0.0
  %85 = vmatpush1.msra.mxu0 0.0
  %86 = vmatprep.subr.mxu0 0.0
  %87 = vmatpush1.msra.mxu0 0.0
  %88 = vmatprep.subr.mxu0 0.0
  %89 = vmatpush1.msra.mxu0 0.0
  %90 = vmatprep.subr.mxu0 0.0
  %91 = vmatpush1.msra.mxu0 0.0
  %92 = vmatprep.subr.mxu0 0.0
  %93 = vmatpush1.msra.mxu0 0.0
  %94 = vmatprep.subr.mxu0 0.0
  %95 = vmatpush1.msra.mxu0 0.0
  %96 = vmatprep.subr.mxu0 0.0
  %97 = vmatpush1.msra.mxu0 0.0
  %98 = vmatprep.subr.mxu0 0.0
  %99 = vmatpush1.msra.mxu0 0.0
  %100 = vmatprep.subr.mxu0 0.0
  %101 = vmatpush1.msra.mxu0 0.0
  %102 = vmatprep.subr.mxu0 0.0
  %103 = vmatpush1.msra.mxu0 0.0
  %104 = vmatprep.subr.mxu0 0.0
  %105 = vmatpush1.msra.mxu0 0.0
  %106 = vmatprep.subr.mxu0 0.0
  %107 = vmatpush1.msra.mxu0 0.0
  %108 = vmatprep.subr.mxu0 0.0
  %109 = vmatpush1.msra.mxu0 0.0
  %110 = vmatprep.subr.mxu0 0.0
  %111 = vmatpush1.msra.mxu0 0.0
  %112 = vmatprep.subr.mxu0 0.0
  %113 = vmatpush1.msra.mxu0 0.0
  %114 = vmatprep.subr.mxu0 0.0
  %115 = vmatpush1.msra.mxu0 0.0
  %116 = vmatprep.subr.mxu0 0.0
  %117 = vmatpush1.msra.mxu0 0.0
  %118 = vmatprep.mubr.f32.mxu0 0.0
  %119 = vmatmul.mubr.f32.gmra.mrb[0].mxu0 %v49
  %v120 = vpop.f32.mrb[0].mxu0
  %v121 = vadd.f32 0.0, %v120
  %v122 = vpop.f32.mrb[0].mxu0
  %v123 = vadd.f32 0.0, %v122
  %124 = vmatprep.mubr.f32.mxu0 0.0
  %125 = vmatmul.mubr.f32.gmra.mrb[0].mxu0 %v52
  %v126 = vpop.f32.mrb[0].mxu0
  %v127 = vadd.f32 0.0, %v126
  %v128 = vpop.f32.mrb[0].mxu0
  %v129 = vadd.f32 0.0, %v128
  %130 = vdwg.mxu0
  %v131 = vld [vmem:[%s3] sm:$0x3f]
  %v132 = vld [vmem:[%s3 + $0x8] sm:$0x3f]
  %vm133 = vcmask 523264
  %v135 = vsel %vm133, %v132, 0
  %v138 = vsel %vm133, %v123, 0
  %v141 = vsel %vm133, %v129, 0
  %143 = vmatprep.subr.mxu0 %v138
  %144 = vmatpush1.xpose.msra.mxu0 %v121
  %145 = vmatprep.subr.mxu0 %v141
  %146 = vmatpush1.xpose.msra.mxu0 %v127
  %147 = vmatprep.subr.mxu0 0.0
  %148 = vmatpush1.xpose.msra.mxu0 0.0
  %149 = vmatprep.subr.mxu0 0.0
  %150 = vmatpush1.xpose.msra.mxu0 0.0
  %151 = vmatprep.subr.mxu0 0.0
  %152 = vmatpush1.xpose.msra.mxu0 0.0
  %153 = vmatprep.subr.mxu0 0.0
  %154 = vmatpush1.xpose.msra.mxu0 0.0
  %155 = vmatprep.subr.mxu0 0.0
  %156 = vmatpush1.xpose.msra.mxu0 0.0
  %157 = vmatprep.subr.mxu0 0.0
  %158 = vmatpush1.xpose.msra.mxu0 0.0
  %159 = vmatprep.subr.mxu0 0.0
  %160 = vmatpush1.xpose.msra.mxu0 0.0
  %161 = vmatprep.subr.mxu0 0.0
  %162 = vmatpush1.xpose.msra.mxu0 0.0
  %163 = vmatprep.subr.mxu0 0.0
  %164 = vmatpush1.xpose.msra.mxu0 0.0
  %165 = vmatprep.subr.mxu0 0.0
  %166 = vmatpush1.xpose.msra.mxu0 0.0
  %167 = vmatprep.subr.mxu0 0.0
  %168 = vmatpush1.xpose.msra.mxu0 0.0
  %169 = vmatprep.subr.mxu0 0.0
  %170 = vmatpush1.xpose.msra.mxu0 0.0
  %171 = vmatprep.subr.mxu0 0.0
  %172 = vmatpush1.xpose.msra.mxu0 0.0
  %173 = vmatprep.subr.mxu0 0.0
  %174 = vmatpush1.xpose.msra.mxu0 0.0
  %175 = vmatprep.subr.mxu0 0.0
  %176 = vmatpush1.xpose.msra.mxu0 0.0
  %177 = vmatprep.subr.mxu0 0.0
  %178 = vmatpush1.xpose.msra.mxu0 0.0
  %179 = vmatprep.subr.mxu0 0.0
  %180 = vmatpush1.xpose.msra.mxu0 0.0
  %181 = vmatprep.subr.mxu0 0.0
  %182 = vmatpush1.xpose.msra.mxu0 0.0
  %183 = vmatprep.subr.mxu0 0.0
  %184 = vmatpush1.xpose.msra.mxu0 0.0
  %185 = vmatprep.subr.mxu0 0.0
  %186 = vmatpush1.xpose.msra.mxu0 0.0
  %187 = vmatprep.subr.mxu0 0.0
  %188 = vmatpush1.xpose.msra.mxu0 0.0
  %189 = vmatprep.subr.mxu0 0.0
  %190 = vmatpush1.xpose.msra.mxu0 0.0
  %191 = vmatprep.subr.mxu0 0.0
  %192 = vmatpush1.xpose.msra.mxu0 0.0
  %193 = vmatprep.subr.mxu0 0.0
  %194 = vmatpush1.xpose.msra.mxu0 0.0
  %195 = vmatprep.subr.mxu0 0.0
  %196 = vmatpush1.xpose.msra.mxu0 0.0
  %197 = vmatprep.subr.mxu0 0.0
  %198 = vmatpush1.xpose.msra.mxu0 0.0
  %199 = vmatprep.subr.mxu0 0.0
  %200 = vmatpush1.xpose.msra.mxu0 0.0
  %201 = vmatprep.subr.mxu0 0.0
  %202 = vmatpush1.xpose.msra.mxu0 0.0
  %203 = vmatprep.subr.mxu0 0.0
  %204 = vmatpush1.xpose.msra.mxu0 0.0
  %205 = vmatprep.subr.mxu0 0.0
  %206 = vmatpush1.xpose.msra.mxu0 0.0
  %207 = vmatprep.mubr.f32.mxu0 %v135
  %208 = vmatmul.mubr.f32.gmra.mrb[0].mxu0 %v131
  %v209 = vpop.f32.mrb[0].mxu0
  %v210 = vadd.f32 0.0, %v209
  %v211 = vpop.f32.mrb[0].mxu0
  %212 = vdwg.mxu0
  %v213 = vlaneseq
  %v214 = vshrl.u32 %v213, 7
  %v215 = vsub.s32 0, %v214
  %v216 = vrot.slane %v210, %v215
  %218 = vbcast.lane.b32.xlu0 %v216, 256
  %v219 = vpop.permute.xlu0 %218
  %s221 = sor.u32 256, 8
  %222 = vbcast.lane.b32.xlu0 %v216, %s221
  %v223 = vpop.permute.xlu0 %222
  %v224 = vlaneseq
  %v225 = vshrl.u32 %v224, 7
  %v226 = vsub.s32 1, %v225
  %v227 = vrot.slane %v210, %v226
  %229 = vbcast.lane.b32.xlu0 %v227, 256
  %v230 = vpop.permute.xlu0 %229
  %s232 = sor.u32 256, 8
  %233 = vbcast.lane.b32.xlu0 %v227, %s232
  %v234 = vpop.permute.xlu0 %233
  %v235 = vlaneseq
  %v236 = vshrl.u32 %v235, 7
  %v237 = vsub.s32 2, %v236
  %v238 = vrot.slane %v210, %v237
  %240 = vbcast.lane.b32.xlu0 %v238, 256
  %v241 = vpop.permute.xlu0 %240
  %s243 = sor.u32 256, 8
  %244 = vbcast.lane.b32.xlu0 %v238, %s243
  %v245 = vpop.permute.xlu0 %244
  %v247 = vcombine.high %v210, %v210
  %v249 = vunpack.c.l.s4 1966171168
  %v250 = vunpack.c.0.s8 %v249
  %v251 = vlaneseq
  %v252 = vshrl.u32 %v251, 7
  %v253 = vsub.s32 %v250, %v252
  %v254 = vrot.slane %v210, %v253
  %v256 = vunpack.c.l.s4 1966171168
  %v257 = vunpack.c.0.s8 %v256
  %v258 = vlaneseq
  %v259 = vshrl.u32 %v258, 7
  %v260 = vsub.s32 %v257, %v259
  %v261 = vrot.slane %v247, %v260
  %v262 = vcombine.high %v254, %v254
  %v263 = vcombine.high %v261, %v261
  %v265 = vunpack.c.l.s4 1966171168
  %v266 = vunpack.c.0.s8 %v265
  %v267 = vlaneseq
  %v268 = vshrl.u32 %v267, 7
  %v269 = vsub.s32 %v266, %v268
  %v270 = vrot.slane %v261, %v269
  %v272 = vunpack.c.l.s4 1966171168
  %v273 = vunpack.c.0.s8 %v272
  %v274 = vlaneseq
  %v275 = vshrl.u32 %v274, 7
  %v276 = vsub.s32 %v273, %v275
  %v277 = vrot.slane %v262, %v276
  %v279 = vunpack.c.l.s4 1966171168
  %v280 = vunpack.c.0.s8 %v279
  %v281 = vlaneseq
  %v282 = vshrl.u32 %v281, 7
  %v283 = vsub.s32 %v280, %v282
  %v284 = vrot.slane %v263, %v283
  %v285 = vcombine.high %v277, %v277
  %v286 = vlaneseq
  %v287 = vshrl.u32 %v286, 7
  %v288 = vsub.s32 0, %v287
  %v289 = vrot.slane %v285, %v288
  %v290 = vlaneseq
  %v291 = vshrl.u32 %v290, 7
  %v292 = vsub.s32 0, %v291
  %v293 = vrot.slane %v270, %v292
  %v294 = vlaneseq
  %v295 = vshrl.u32 %v294, 7
  %v296 = vsub.s32 0, %v295
  %v297 = vrot.slane %v284, %v296
  %v301 = vadd.f32 %v219, %v289
  %v302 = vadd.f32 %v223, %v289
  %v303 = vadd.f32 %v230, %v293
  %v304 = vadd.f32 %v234, %v293
  %v305 = vadd.f32 %v241, %v297
  %v306 = vadd.f32 %v245, %v297
  %vm307 = vcmp.ge.f32.partialorder %v301, 0.0
  %vm308 = vcmp.ge.f32.partialorder %v302, 0.0
  %vm309 = vcmp.ge.f32.partialorder %v303, 0.0
  %vm310 = vcmp.ge.f32.partialorder %v304, 0.0
  %vm311 = vcmp.ge.f32.partialorder %v305, 0.0
  %vm312 = vcmp.ge.f32.partialorder %v306, 0.0
  %v313 = vmul.f32 %v301, 0.2
  %v314 = vmul.f32 %v302, 0.2
  %v315 = vmul.f32 %v303, 0.2
  %v316 = vmul.f32 %v304, 0.2
  %v317 = vmul.f32 %v305, 0.2
  %v318 = vmul.f32 %v306, 0.2
  %v319 = vsel %vm307, %v301, %v313
  %v320 = vsel %vm308, %v302, %v314
  %v321 = vsel %vm309, %v303, %v315
  %v322 = vsel %vm310, %v304, %v316
  %v323 = vsel %vm311, %v305, %v317
  %v324 = vsel %vm312, %v306, %v318
  %v325 = vadd.f32 %v319, %v39
  %v326 = vadd.f32 %v320, %v40
  %v327 = vadd.f32 %v321, %v39
  %v328 = vadd.f32 %v322, %v40
  %v329 = vadd.f32 %v323, %v39
  %v330 = vadd.f32 %v324, %v40
  %v331 = vsel %vm47, %v325, -inf
  %332 = vmax.xlane.f32.xlu0 %v331
  %v333 = vpop.xlane.xlu0 %332
  %v334 = vsel %vm47, %v326, -inf
  %335 = vmax.xlane.f32.xlu0 %v334
  %v336 = vpop.xlane.xlu0 %335
  %v337 = vsel %vm47, %v327, -inf
  %338 = vmax.xlane.f32.xlu0 %v337
  %v339 = vpop.xlane.xlu0 %338
  %v340 = vsel %vm47, %v328, -inf
  %341 = vmax.xlane.f32.xlu0 %v340
  %v342 = vpop.xlane.xlu0 %341
  %v343 = vsel %vm47, %v329, -inf
  %344 = vmax.xlane.f32.xlu0 %v343
  %v345 = vpop.xlane.xlu0 %344
  %v346 = vsel %vm47, %v330, -inf
  %347 = vmax.xlane.f32.xlu0 %v346
  %v348 = vpop.xlane.xlu0 %347
  %v349 = vsub.f32 %v325, %v333
  %v350 = vsub.f32 %v326, %v336
  %v351 = vsub.f32 %v327, %v339
  %v352 = vsub.f32 %v328, %v342
  %v353 = vsub.f32 %v329, %v345
  %v354 = vsub.f32 %v330, %v348
  %v355 = vmul.f32 %v349, 1.442695
  %v356 = vpow.pop %v355
  %v357 = vmul.f32 %v350, 1.442695
  %v358 = vpow.pop %v357
  %v359 = vmul.f32 %v351, 1.442695
  %v360 = vpow.pop %v359
  %v361 = vmul.f32 %v352, 1.442695
  %v362 = vpow.pop %v361
  %v363 = vmul.f32 %v353, 1.442695
  %v364 = vpow.pop %v363
  %v365 = vmul.f32 %v354, 1.442695
  %v366 = vpow.pop %v365
  %v367 = vsel %vm47, %v356, 0.0
  %368 = vadd.xlane.f32.xlu0 %v367
  %v369 = vpop.xlane.xlu0 %368
  %v370 = vsel %vm47, %v358, 0.0
  %371 = vadd.xlane.f32.xlu0 %v370
  %v372 = vpop.xlane.xlu0 %371
  %v373 = vsel %vm47, %v360, 0.0
  %374 = vadd.xlane.f32.xlu0 %v373
  %v375 = vpop.xlane.xlu0 %374
  %v376 = vsel %vm47, %v362, 0.0
  %377 = vadd.xlane.f32.xlu0 %v376
  %v378 = vpop.xlane.xlu0 %377
  %v379 = vsel %vm47, %v364, 0.0
  %380 = vadd.xlane.f32.xlu0 %v379
  %v381 = vpop.xlane.xlu0 %380
  %v382 = vsel %vm47, %v366, 0.0
  %383 = vadd.xlane.f32.xlu0 %v382
  %v384 = vpop.xlane.xlu0 %383
  %v385 = vrcp.pop %v369
  %v386 = vrcp.pop %v372
  %v387 = vrcp.pop %v375
  %v388 = vrcp.pop %v378
  %v389 = vrcp.pop %v381
  %v390 = vrcp.pop %v384
  %v391 = vmul.f32 %v356, %v385
  %v392 = vmul.f32 %v358, %v386
  %v393 = vmul.f32 %v360, %v387
  %v394 = vmul.f32 %v362, %v388
  %v395 = vmul.f32 %v364, %v389
  %v396 = vmul.f32 %v366, %v390
  %v398 = vsel %vm47, %v391, 0
  %v401 = vsel %vm47, %v392, 0
  %403 = vmatprep.subr.mxu0 0.0
  %404 = vmatpush1.msra.mxu0 %v121
  %405 = vmatprep.subr.mxu0 0.0
  %406 = vmatpush1.msra.mxu0 %v127
  %407 = vmatprep.subr.mxu0 0.0
  %408 = vmatpush1.msra.mxu0 0.0
  %409 = vmatprep.subr.mxu0 0.0
  %410 = vmatpush1.msra.mxu0 0.0
  %411 = vmatprep.subr.mxu0 0.0
  %412 = vmatpush1.msra.mxu0 0.0
  %413 = vmatprep.subr.mxu0 0.0
  %414 = vmatpush1.msra.mxu0 0.0
  %415 = vmatprep.subr.mxu0 0.0
  %416 = vmatpush1.msra.mxu0 0.0
  %417 = vmatprep.subr.mxu0 0.0
  %418 = vmatpush1.msra.mxu0 0.0
  %419 = vmatprep.subr.mxu0 0.0
  %420 = vmatpush1.msra.mxu0 0.0
  %421 = vmatprep.subr.mxu0 0.0
  %422 = vmatpush1.msra.mxu0 0.0
  %423 = vmatprep.subr.mxu0 0.0
  %424 = vmatpush1.msra.mxu0 0.0
  %425 = vmatprep.subr.mxu0 0.0
  %426 = vmatpush1.msra.mxu0 0.0
  %427 = vmatprep.subr.mxu0 0.0
  %428 = vmatpush1.msra.mxu0 0.0
  %429 = vmatprep.subr.mxu0 0.0
  %430 = vmatpush1.msra.mxu0 0.0
  %431 = vmatprep.subr.mxu0 0.0
  %432 = vmatpush1.msra.mxu0 0.0
  %433 = vmatprep.subr.mxu0 0.0
  %434 = vmatpush1.msra.mxu0 0.0
  %435 = vmatprep.subr.mxu0 0.0
  %436 = vmatpush1.msra.mxu0 0.0
  %437 = vmatprep.subr.mxu0 0.0
  %438 = vmatpush1.msra.mxu0 0.0
  %439 = vmatprep.subr.mxu0 0.0
  %440 = vmatpush1.msra.mxu0 0.0
  %441 = vmatprep.subr.mxu0 0.0
  %442 = vmatpush1.msra.mxu0 0.0
  %443 = vmatprep.subr.mxu0 0.0
  %444 = vmatpush1.msra.mxu0 0.0
  %445 = vmatprep.subr.mxu0 0.0
  %446 = vmatpush1.msra.mxu0 0.0
  %447 = vmatprep.subr.mxu0 0.0
  %448 = vmatpush1.msra.mxu0 0.0
  %449 = vmatprep.subr.mxu0 0.0
  %450 = vmatpush1.msra.mxu0 0.0
  %451 = vmatprep.subr.mxu0 0.0
  %452 = vmatpush1.msra.mxu0 0.0
  %453 = vmatprep.subr.mxu0 0.0
  %454 = vmatpush1.msra.mxu0 0.0
  %455 = vmatprep.subr.mxu0 0.0
  %456 = vmatpush1.msra.mxu0 0.0
  %457 = vmatprep.subr.mxu0 0.0
  %458 = vmatpush1.msra.mxu0 0.0
  %459 = vmatprep.subr.mxu0 0.0
  %460 = vmatpush1.msra.mxu0 0.0
  %461 = vmatprep.subr.mxu0 0.0
  %462 = vmatpush1.msra.mxu0 0.0
  %463 = vmatprep.subr.mxu0 0.0
  %464 = vmatpush1.msra.mxu0 0.0
  %465 = vmatprep.subr.mxu0 0.0
  %466 = vmatpush1.msra.mxu0 0.0
  %467 = vmatprep.mubr.f32.mxu0 0.0
  %468 = vmatmul.mubr.f32.gmra.mrb[0].mxu0 %v398
  %v469 = vpop.f32.mrb[0].mxu0
  %v470 = vadd.f32 0.0, %v469
  %v471 = vpop.f32.mrb[0].mxu0
  %472 = vmatprep.mubr.f32.mxu0 0.0
  %473 = vmatmul.mubr.f32.gmra.mrb[0].mxu0 %v401
  %v474 = vpop.f32.mrb[0].mxu0
  %v475 = vadd.f32 0.0, %v474
  %v476 = vpop.f32.mrb[0].mxu0
  %477 = vdwg.mxu0
  %480 = vrot.lane.b32.xlu0 %v121, 64
  %v481 = vpop.permute.xlu0 %480
  %482 = vrot.lane.b32.xlu0 %v127, 64
  %v483 = vpop.permute.xlu0 %482
  %v487 = vsel %vm47, %v393, 0
  %v490 = vsel %vm47, %v394, 0
  %492 = vmatprep.subr.mxu0 0.0
  %493 = vmatpush1.msra.mxu0 %v481
  %494 = vmatprep.subr.mxu0 0.0
  %495 = vmatpush1.msra.mxu0 %v483
  %496 = vmatprep.subr.mxu0 0.0
  %497 = vmatpush1.msra.mxu0 0.0
  %498 = vmatprep.subr.mxu0 0.0
  %499 = vmatpush1.msra.mxu0 0.0
  %500 = vmatprep.subr.mxu0 0.0
  %501 = vmatpush1.msra.mxu0 0.0
  %502 = vmatprep.subr.mxu0 0.0
  %503 = vmatpush1.msra.mxu0 0.0
  %504 = vmatprep.subr.mxu0 0.0
  %505 = vmatpush1.msra.mxu0 0.0
  %506 = vmatprep.subr.mxu0 0.0
  %507 = vmatpush1.msra.mxu0 0.0
  %508 = vmatprep.subr.mxu0 0.0
  %509 = vmatpush1.msra.mxu0 0.0
  %510 = vmatprep.subr.mxu0 0.0
  %511 = vmatpush1.msra.mxu0 0.0
  %512 = vmatprep.subr.mxu0 0.0
  %513 = vmatpush1.msra.mxu0 0.0
  %514 = vmatprep.subr.mxu0 0.0
  %515 = vmatpush1.msra.mxu0 0.0
  %516 = vmatprep.subr.mxu0 0.0
  %517 = vmatpush1.msra.mxu0 0.0
  %518 = vmatprep.subr.mxu0 0.0
  %519 = vmatpush1.msra.mxu0 0.0
  %520 = vmatprep.subr.mxu0 0.0
  %521 = vmatpush1.msra.mxu0 0.0
  %522 = vmatprep.subr.mxu0 0.0
  %523 = vmatpush1.msra.mxu0 0.0
  %524 = vmatprep.subr.mxu0 0.0
  %525 = vmatpush1.msra.mxu0 0.0
  %526 = vmatprep.subr.mxu0 0.0
  %527 = vmatpush1.msra.mxu0 0.0
  %528 = vmatprep.subr.mxu0 0.0
  %529 = vmatpush1.msra.mxu0 0.0
  %530 = vmatprep.subr.mxu0 0.0
  %531 = vmatpush1.msra.mxu0 0.0
  %532 = vmatprep.subr.mxu0 0.0
  %533 = vmatpush1.msra.mxu0 0.0
  %534 = vmatprep.subr.mxu0 0.0
  %535 = vmatpush1.msra.mxu0 0.0
  %536 = vmatprep.subr.mxu0 0.0
  %537 = vmatpush1.msra.mxu0 0.0
  %538 = vmatprep.subr.mxu0 0.0
  %539 = vmatpush1.msra.mxu0 0.0
  %540 = vmatprep.subr.mxu0 0.0
  %541 = vmatpush1.msra.mxu0 0.0
  %542 = vmatprep.subr.mxu0 0.0
  %543 = vmatpush1.msra.mxu0 0.0
  %544 = vmatprep.subr.mxu0 0.0
  %545 = vmatpush1.msra.mxu0 0.0
  %546 = vmatprep.subr.mxu0 0.0
  %547 = vmatpush1.msra.mxu0 0.0
  %548 = vmatprep.subr.mxu0 0.0
  %549 = vmatpush1.msra.mxu0 0.0
  %550 = vmatprep.subr.mxu0 0.0
  %551 = vmatpush1.msra.mxu0 0.0
  %552 = vmatprep.subr.mxu0 0.0
  %553 = vmatpush1.msra.mxu0 0.0
  %554 = vmatprep.subr.mxu0 0.0
  %555 = vmatpush1.msra.mxu0 0.0
  %556 = vmatprep.mubr.f32.mxu0 0.0
  %557 = vmatmul.mubr.f32.gmra.mrb[0].mxu0 %v487
  %v558 = vpop.f32.mrb[0].mxu0
  %v559 = vadd.f32 0.0, %v558
  %v560 = vpop.f32.mrb[0].mxu0
  %561 = vmatprep.mubr.f32.mxu0 0.0
  %562 = vmatmul.mubr.f32.gmra.mrb[0].mxu0 %v490
  %v563 = vpop.f32.mrb[0].mxu0
  %v564 = vadd.f32 0.0, %v563
  %v565 = vpop.f32.mrb[0].mxu0
  %566 = vdwg.mxu0
  %v568 = vsel %vm47, %v395, 0
  %v571 = vsel %vm47, %v396, 0
  %573 = vmatprep.subr.mxu0 0.0
  %574 = vmatpush1.msra.mxu0 %v123
  %575 = vmatprep.subr.mxu0 0.0
  %576 = vmatpush1.msra.mxu0 %v129
  %577 = vmatprep.subr.mxu0 0.0
  %578 = vmatpush1.msra.mxu0 0.0
  %579 = vmatprep.subr.mxu0 0.0
  %580 = vmatpush1.msra.mxu0 0.0
  %581 = vmatprep.subr.mxu0 0.0
  %582 = vmatpush1.msra.mxu0 0.0
  %583 = vmatprep.subr.mxu0 0.0
  %584 = vmatpush1.msra.mxu0 0.0
  %585 = vmatprep.subr.mxu0 0.0
  %586 = vmatpush1.msra.mxu0 0.0
  %587 = vmatprep.subr.mxu0 0.0
  %588 = vmatpush1.msra.mxu0 0.0
  %589 = vmatprep.subr.mxu0 0.0
  %590 = vmatpush1.msra.mxu0 0.0
  %591 = vmatprep.subr.mxu0 0.0
  %592 = vmatpush1.msra.mxu0 0.0
  %593 = vmatprep.subr.mxu0 0.0
  %594 = vmatpush1.msra.mxu0 0.0
  %595 = vmatprep.subr.mxu0 0.0
  %596 = vmatpush1.msra.mxu0 0.0
  %597 = vmatprep.subr.mxu0 0.0
  %598 = vmatpush1.msra.mxu0 0.0
  %599 = vmatprep.subr.mxu0 0.0
  %600 = vmatpush1.msra.mxu0 0.0
  %601 = vmatprep.subr.mxu0 0.0
  %602 = vmatpush1.msra.mxu0 0.0
  %603 = vmatprep.subr.mxu0 0.0
  %604 = vmatpush1.msra.mxu0 0.0
  %605 = vmatprep.subr.mxu0 0.0
  %606 = vmatpush1.msra.mxu0 0.0
  %607 = vmatprep.subr.mxu0 0.0
  %608 = vmatpush1.msra.mxu0 0.0
  %609 = vmatprep.subr.mxu0 0.0
  %610 = vmatpush1.msra.mxu0 0.0
  %611 = vmatprep.subr.mxu0 0.0
  %612 = vmatpush1.msra.mxu0 0.0
  %613 = vmatprep.subr.mxu0 0.0
  %614 = vmatpush1.msra.mxu0 0.0
  %615 = vmatprep.subr.mxu0 0.0
  %616 = vmatpush1.msra.mxu0 0.0
  %617 = vmatprep.subr.mxu0 0.0
  %618 = vmatpush1.msra.mxu0 0.0
  %619 = vmatprep.subr.mxu0 0.0
  %620 = vmatpush1.msra.mxu0 0.0
  %621 = vmatprep.subr.mxu0 0.0
  %622 = vmatpush1.msra.mxu0 0.0
  %623 = vmatprep.subr.mxu0 0.0
  %624 = vmatpush1.msra.mxu0 0.0
  %625 = vmatprep.subr.mxu0 0.0
  %626 = vmatpush1.msra.mxu0 0.0
  %627 = vmatprep.subr.mxu0 0.0
  %628 = vmatpush1.msra.mxu0 0.0
  %629 = vmatprep.subr.mxu0 0.0
  %630 = vmatpush1.msra.mxu0 0.0
  %631 = vmatprep.subr.mxu0 0.0
  %632 = vmatpush1.msra.mxu0 0.0
  %633 = vmatprep.subr.mxu0 0.0
  %634 = vmatpush1.msra.mxu0 0.0
  %635 = vmatprep.subr.mxu0 0.0
  %636 = vmatpush1.msra.mxu0 0.0
  %637 = vmatprep.mubr.f32.mxu0 0.0
  %638 = vmatmul.mubr.f32.gmra.mrb[0].mxu0 %v568
  %v639 = vpop.f32.mrb[0].mxu0
  %v640 = vadd.f32 0.0, %v639
  %v641 = vpop.f32.mrb[0].mxu0
  %642 = vmatprep.mubr.f32.mxu0 0.0
  %643 = vmatmul.mubr.f32.gmra.mrb[0].mxu0 %v571
  %v644 = vpop.f32.mrb[0].mxu0
  %v645 = vadd.f32 0.0, %v644
  %v646 = vpop.f32.mrb[0].mxu0
  %647 = vdwg.mxu0
  %650 = vrot.lane.b32.xlu0 %v559, 64
  %v651 = vpop.permute.xlu0 %650
  %652 = vrot.lane.b32.xlu0 %v564, 64
  %v653 = vpop.permute.xlu0 %652
  %v656 = vsel %vm133, %v470, %v651
  %v657 = vsel %vm133, %v475, %v653
  %v658 = vld [vmem:[%s4] sm:$0x3]
  %v660 = vlaneseq
  %v661 = vshrl.u32 %v660, 7
  %v662 = vsub.s32 0, %v661
  %v663 = vrot.slane %v658, %v662
  %v664 = vlaneseq
  %v665 = vshrl.u32 %v664, 7
  %v666 = vsub.s32 1, %v665
  %v667 = vrot.slane %v658, %v666
  %v670 = vadd.f32 %v656, %v663
  %v671 = vadd.f32 %v640, %v667
  %v672 = vadd.f32 %v657, %v663
  %v673 = vadd.f32 %v645, %v667
  %v674 = vld [vmem:[%s5] sm:$0xff]
  %v675 = vld [vmem:[%s5 + $0x8] sm:$0xff]
  %v676 = vld [vmem:[%s5 + $0x10] sm:$0xff]
  %v677 = vld [vmem:[%s5 + $0x18] sm:$0xff]
  %v678 = vld [vmem:[%s5 + $0x20] sm:$0xff]
  %v679 = vld [vmem:[%s5 + $0x28] sm:$0xff]
  %v680 = vld [vmem:[%s5 + $0x30] sm:$0xff]
  %v681 = vld [vmem:[%s5 + $0x38] sm:$0xff]
  %v682 = vld [vmem:[%s5 + $0x40] sm:$0xff]
  %v683 = vld [vmem:[%s5 + $0x48] sm:$0xff]
  %v684 = vld [vmem:[%s5 + $0x50] sm:$0xff]
  %v685 = vld [vmem:[%s5 + $0x58] sm:$0xff]
  %v686 = vld [vmem:[%s5 + $0x60] sm:$0xff]
  %v687 = vld [vmem:[%s5 + $0x68] sm:$0xff]
  %v688 = vld [vmem:[%s5 + $0x70] sm:$0xff]
  %v689 = vld [vmem:[%s5 + $0x78] sm:$0xff]
  %v690 = vld [vmem:[%s5 + $0x80] sm:$0xff]
  %v691 = vld [vmem:[%s5 + $0x88] sm:$0xff]
  %v692 = vld [vmem:[%s5 + $0x90] sm:$0xff]
  %v693 = vld [vmem:[%s5 + $0x98] sm:$0xff]
  %v694 = vld [vmem:[%s5 + $0xa0] sm:$0xff]
  %v695 = vld [vmem:[%s5 + $0xa8] sm:$0xff]
  %v696 = vld [vmem:[%s5 + $0xb0] sm:$0xff]
  %v697 = vld [vmem:[%s5 + $0xb8] sm:$0xff]
  %v698 = vld [vmem:[%s6] sm:$0x1]
  %v700 = vlaneseq
  %v701 = vshrl.u32 %v700, 7
  %v702 = vsub.s32 0, %v701
  %v703 = vrot.slane %v698, %v702
  %v706 = vsel %vm133, %v671, 0
  %v709 = vsel %vm133, %v673, 0
  %711 = vmatprep.subr.mxu0 0.0
  %712 = vmatpush1.msra.mxu0 %v674
  %713 = vmatprep.subr.mxu0 0.0
  %714 = vmatpush1.msra.mxu0 %v675
  %715 = vmatprep.subr.mxu0 0.0
  %716 = vmatpush1.msra.mxu0 %v676
  %717 = vmatprep.subr.mxu0 0.0
  %718 = vmatpush1.msra.mxu0 %v677
  %719 = vmatprep.subr.mxu0 0.0
  %720 = vmatpush1.msra.mxu0 %v678
  %721 = vmatprep.subr.mxu0 0.0
  %722 = vmatpush1.msra.mxu0 %v679
  %723 = vmatprep.subr.mxu0 0.0
  %724 = vmatpush1.msra.mxu0 %v680
  %725 = vmatprep.subr.mxu0 0.0
  %726 = vmatpush1.msra.mxu0 %v681
  %727 = vmatprep.subr.mxu0 0.0
  %728 = vmatpush1.msra.mxu0 %v682
  %729 = vmatprep.subr.mxu0 0.0
  %730 = vmatpush1.msra.mxu0 %v683
  %731 = vmatprep.subr.mxu0 0.0
  %732 = vmatpush1.msra.mxu0 %v684
  %733 = vmatprep.subr.mxu0 0.0
  %734 = vmatpush1.msra.mxu0 %v685
  %735 = vmatprep.subr.mxu0 0.0
  %736 = vmatpush1.msra.mxu0 %v686
  %737 = vmatprep.subr.mxu0 0.0
  %738 = vmatpush1.msra.mxu0 %v687
  %739 = vmatprep.subr.mxu0 0.0
  %740 = vmatpush1.msra.mxu0 %v688
  %741 = vmatprep.subr.mxu0 0.0
  %742 = vmatpush1.msra.mxu0 %v689
  %743 = vmatprep.subr.mxu0 0.0
  %744 = vmatpush1.msra.mxu0 %v690
  %745 = vmatprep.subr.mxu0 0.0
  %746 = vmatpush1.msra.mxu0 %v691
  %747 = vmatprep.subr.mxu0 0.0
  %748 = vmatpush1.msra.mxu0 %v692
  %749 = vmatprep.subr.mxu0 0.0
  %750 = vmatpush1.msra.mxu0 %v693
  %751 = vmatprep.subr.mxu0 0.0
  %752 = vmatpush1.msra.mxu0 %v694
  %753 = vmatprep.subr.mxu0 0.0
  %754 = vmatpush1.msra.mxu0 %v695
  %755 = vmatprep.subr.mxu0 0.0
  %756 = vmatpush1.msra.mxu0 %v696
  %757 = vmatprep.subr.mxu0 0.0
  %758 = vmatpush1.msra.mxu0 %v697
  %759 = vmatprep.subr.mxu0 0.0
  %760 = vmatpush1.msra.mxu0 0.0
  %761 = vmatprep.subr.mxu0 0.0
  %762 = vmatpush1.msra.mxu0 0.0
  %763 = vmatprep.subr.mxu0 0.0
  %764 = vmatpush1.msra.mxu0 0.0
  %765 = vmatprep.subr.mxu0 0.0
  %766 = vmatpush1.msra.mxu0 0.0
  %767 = vmatprep.subr.mxu0 0.0
  %768 = vmatpush1.msra.mxu0 0.0
  %769 = vmatprep.subr.mxu0 0.0
  %770 = vmatpush1.msra.mxu0 0.0
  %771 = vmatprep.subr.mxu0 0.0
  %772 = vmatpush1.msra.mxu0 0.0
  %773 = vmatprep.subr.mxu0 0.0
  %774 = vmatpush1.msra.mxu0 0.0
  %775 = vmatprep.mubr.f32.mxu0 %v706
  %776 = vmatmul.mubr.f32.gmra.mrb[0].mxu0 %v670
  %v777 = vpop.f32.mrb[0].mxu0
  %v778 = vadd.f32 %v703, %v777
  %v779 = vpop.f32.mrb[0].mxu0
  %780 = vmatprep.mubr.f32.mxu0 %v709
  %781 = vmatmul.mubr.f32.gmra.mrb[0].mxu0 %v672
  %v782 = vpop.f32.mrb[0].mxu0
  %v783 = vadd.f32 %v703, %v782
  %v784 = vpop.f32.mrb[0].mxu0
  %785 = vdwg.mxu0
  %v786 = vmax.f32 %v778, 0.0
  %v787 = vmax.f32 %v783, 0.0
  %v788 = vld [vmem:[%s7] sm:$0xff]
  %v789 = vld [vmem:[%s7 + $0x8] sm:$0xff]
  %v790 = vld [vmem:[%s7 + $0x10] sm:$0xff]
  %v791 = vld [vmem:[%s7 + $0x18] sm:$0xff]
  %v792 = vld [vmem:[%s7 + $0x20] sm:$0xff]
  %v793 = vld [vmem:[%s7 + $0x28] sm:$0xff]
  %v794 = vld [vmem:[%s7 + $0x30] sm:$0xff]
  %v795 = vld [vmem:[%s7 + $0x38] sm:$0xff]
  %v797 = vsel %vm133, %v786, 0
  %v800 = vsel %vm133, %v787, 0
  %802 = vmatprep.subr.mxu0 0.0
  %803 = vmatpush1.msra.mxu0 %v788
  %804 = vmatprep.subr.mxu0 0.0
  %805 = vmatpush1.msra.mxu0 %v789
  %806 = vmatprep.subr.mxu0 0.0
  %807 = vmatpush1.msra.mxu0 %v790
  %808 = vmatprep.subr.mxu0 0.0
  %809 = vmatpush1.msra.mxu0 %v791
  %810 = vmatprep.subr.mxu0 0.0
  %811 = vmatpush1.msra.mxu0 %v792
  %812 = vmatprep.subr.mxu0 0.0
  %813 = vmatpush1.msra.mxu0 %v793
  %814 = vmatprep.subr.mxu0 0.0
  %815 = vmatpush1.msra.mxu0 %v794
  %816 = vmatprep.subr.mxu0 0.0
  %817 = vmatpush1.msra.mxu0 %v795
  %818 = vmatprep.subr.mxu0 0.0
  %819 = vmatpush1.msra.mxu0 0.0
  %820 = vmatprep.subr.mxu0 0.0
  %821 = vmatpush1.msra.mxu0 0.0
  %822 = vmatprep.subr.mxu0 0.0
  %823 = vmatpush1.msra.mxu0 0.0
  %824 = vmatprep.subr.mxu0 0.0
  %825 = vmatpush1.msra.mxu0 0.0
  %826 = vmatprep.subr.mxu0 0.0
  %827 = vmatpush1.msra.mxu0 0.0
  %828 = vmatprep.subr.mxu0 0.0
  %829 = vmatpush1.msra.mxu0 0.0
  %830 = vmatprep.subr.mxu0 0.0
  %831 = vmatpush1.msra.mxu0 0.0
  %832 = vmatprep.subr.mxu0 0.0
  %833 = vmatpush1.msra.mxu0 0.0
  %834 = vmatprep.subr.mxu0 0.0
  %835 = vmatpush1.msra.mxu0 0.0
  %836 = vmatprep.subr.mxu0 0.0
  %837 = vmatpush1.msra.mxu0 0.0
  %838 = vmatprep.subr.mxu0 0.0
  %839 = vmatpush1.msra.mxu0 0.0
  %840 = vmatprep.subr.mxu0 0.0
  %841 = vmatpush1.msra.mxu0 0.0
  %842 = vmatprep.subr.mxu0 0.0
  %843 = vmatpush1.msra.mxu0 0.0
  %844 = vmatprep.subr.mxu0 0.0
  %845 = vmatpush1.msra.mxu0 0.0
  %846 = vmatprep.subr.mxu0 0.0
  %847 = vmatpush1.msra.mxu0 0.0
  %848 = vmatprep.subr.mxu0 0.0
  %849 = vmatpush1.msra.mxu0 0.0
  %850 = vmatprep.subr.mxu0 0.0
  %851 = vmatpush1.msra.mxu0 0.0
  %852 = vmatprep.subr.mxu0 0.0
  %853 = vmatpush1.msra.mxu0 0.0
  %854 = vmatprep.subr.mxu0 0.0
  %855 = vmatpush1.msra.mxu0 0.0
  %856 = vmatprep.subr.mxu0 0.0
  %857 = vmatpush1.msra.mxu0 0.0
  %858 = vmatprep.subr.mxu0 0.0
  %859 = vmatpush1.msra.mxu0 0.0
  %860 = vmatprep.subr.mxu0 0.0
  %861 = vmatpush1.msra.mxu0 0.0
  %862 = vmatprep.subr.mxu0 0.0
  %863 = vmatpush1.msra.mxu0 0.0
  %864 = vmatprep.subr.mxu0 0.0
  %865 = vmatpush1.msra.mxu0 0.0
  %866 = vmatprep.mubr.f32.mxu0 0.0
  %867 = vmatmul.mubr.f32.gmra.mrb[0].mxu0 %v797
  %v868 = vpop.f32.mrb[0].mxu0
  %v869 = vadd.f32 0.0, %v868
  %v870 = vpop.f32.mrb[0].mxu0
  %871 = vmatprep.mubr.f32.mxu0 0.0
  %872 = vmatmul.mubr.f32.gmra.mrb[0].mxu0 %v800
  %v873 = vpop.f32.mrb[0].mxu0
  %v874 = vadd.f32 0.0, %v873
  %v875 = vpop.f32.mrb[0].mxu0
  %876 = vdwg.mxu0
  %v877 = vld [vmem:[%s8] sm:$0x3f]
  %vm878 = vcmask 48128
  %v880 = vsel %vm878, %v877, 0
  %v883 = vsel %vm878, %v869, 0
  %v886 = vsel %vm878, %v874, 0
  %888 = vmatprep.subr.mxu0 0.0
  %889 = vmatpush1.xpose.msra.mxu0 %v883
  %890 = vmatprep.subr.mxu0 0.0
  %891 = vmatpush1.xpose.msra.mxu0 %v886
  %892 = vmatprep.subr.mxu0 0.0
  %893 = vmatpush1.xpose.msra.mxu0 0.0
  %894 = vmatprep.subr.mxu0 0.0
  %895 = vmatpush1.xpose.msra.mxu0 0.0
  %896 = vmatprep.subr.mxu0 0.0
  %897 = vmatpush1.xpose.msra.mxu0 0.0
  %898 = vmatprep.subr.mxu0 0.0
  %899 = vmatpush1.xpose.msra.mxu0 0.0
  %900 = vmatprep.subr.mxu0 0.0
  %901 = vmatpush1.xpose.msra.mxu0 0.0
  %902 = vmatprep.subr.mxu0 0.0
  %903 = vmatpush1.xpose.msra.mxu0 0.0
  %904 = vmatprep.subr.mxu0 0.0
  %905 = vmatpush1.xpose.msra.mxu0 0.0
  %906 = vmatprep.subr.mxu0 0.0
  %907 = vmatpush1.xpose.msra.mxu0 0.0
  %908 = vmatprep.subr.mxu0 0.0
  %909 = vmatpush1.xpose.msra.mxu0 0.0
  %910 = vmatprep.subr.mxu0 0.0
  %911 = vmatpush1.xpose.msra.mxu0 0.0
  %912 = vmatprep.subr.mxu0 0.0
  %913 = vmatpush1.xpose.msra.mxu0 0.0
  %914 = vmatprep.subr.mxu0 0.0
  %915 = vmatpush1.xpose.msra.mxu0 0.0
  %916 = vmatprep.subr.mxu0 0.0
  %917 = vmatpush1.xpose.msra.mxu0 0.0
  %918 = vmatprep.subr.mxu0 0.0
  %919 = vmatpush1.xpose.msra.mxu0 0.0
  %920 = vmatprep.subr.mxu0 0.0
  %921 = vmatpush1.xpose.msra.mxu0 0.0
  %922 = vmatprep.subr.mxu0 0.0
  %923 = vmatpush1.xpose.msra.mxu0 0.0
  %924 = vmatprep.subr.mxu0 0.0
  %925 = vmatpush1.xpose.msra.mxu0 0.0
  %926 = vmatprep.subr.mxu0 0.0
  %927 = vmatpush1.xpose.msra.mxu0 0.0
  %928 = vmatprep.subr.mxu0 0.0
  %929 = vmatpush1.xpose.msra.mxu0 0.0
  %930 = vmatprep.subr.mxu0 0.0
  %931 = vmatpush1.xpose.msra.mxu0 0.0
  %932 = vmatprep.subr.mxu0 0.0
  %933 = vmatpush1.xpose.msra.mxu0 0.0
  %934 = vmatprep.subr.mxu0 0.0
  %935 = vmatpush1.xpose.msra.mxu0 0.0
  %936 = vmatprep.subr.mxu0 0.0
  %937 = vmatpush1.xpose.msra.mxu0 0.0
  %938 = vmatprep.subr.mxu0 0.0
  %939 = vmatpush1.xpose.msra.mxu0 0.0
  %940 = vmatprep.subr.mxu0 0.0
  %941 = vmatpush1.xpose.msra.mxu0 0.0
  %942 = vmatprep.subr.mxu0 0.0
  %943 = vmatpush1.xpose.msra.mxu0 0.0
  %944 = vmatprep.subr.mxu0 0.0
  %945 = vmatpush1.xpose.msra.mxu0 0.0
  %946 = vmatprep.subr.mxu0 0.0
  %947 = vmatpush1.xpose.msra.mxu0 0.0
  %948 = vmatprep.subr.mxu0 0.0
  %949 = vmatpush1.xpose.msra.mxu0 0.0
  %950 = vmatprep.subr.mxu0 0.0
  %951 = vmatpush1.xpose.msra.mxu0 0.0
  %952 = vmatprep.mubr.f32.mxu0 0.0
  %953 = vmatmul.mubr.f32.gmra.mrb[0].mxu0 %v880
  %v954 = vpop.f32.mrb[0].mxu0
  %v955 = vadd.f32 0.0, %v954
  %v956 = vpop.f32.mrb[0].mxu0
  %957 = vdwg.mxu0
  %v958 = vlaneseq
  %v959 = vshrl.u32 %v958, 7
  %v960 = vsub.s32 0, %v959
  %v961 = vrot.slane %v955, %v960
  %963 = vbcast.lane.b32.xlu0 %v961, 256
  %v964 = vpop.permute.xlu0 %963
  %s966 = sor.u32 256, 8
  %967 = vbcast.lane.b32.xlu0 %v961, %s966
  %v968 = vpop.permute.xlu0 %967
  %v969 = vlaneseq
  %v970 = vshrl.u32 %v969, 7
  %v971 = vsub.s32 1, %v970
  %v972 = vrot.slane %v955, %v971
  %974 = vbcast.lane.b32.xlu0 %v972, 256
  %v975 = vpop.permute.xlu0 %974
  %s977 = sor.u32 256, 8
  %978 = vbcast.lane.b32.xlu0 %v972, %s977
  %v979 = vpop.permute.xlu0 %978
  %v980 = vlaneseq
  %v981 = vshrl.u32 %v980, 7
  %v982 = vsub.s32 2, %v981
  %v983 = vrot.slane %v955, %v982
  %985 = vbcast.lane.b32.xlu0 %v983, 256
  %v986 = vpop.permute.xlu0 %985
  %s988 = sor.u32 256, 8
  %989 = vbcast.lane.b32.xlu0 %v983, %s988
  %v990 = vpop.permute.xlu0 %989
  %v992 = vcombine.high %v955, %v955
  %v994 = vunpack.c.l.s4 1966171168
  %v995 = vunpack.c.0.s8 %v994
  %v996 = vlaneseq
  %v997 = vshrl.u32 %v996, 7
  %v998 = vsub.s32 %v995, %v997
  %v999 = vrot.slane %v955, %v998
  %v1001 = vunpack.c.l.s4 1966171168
  %v1002 = vunpack.c.0.s8 %v1001
  %v1003 = vlaneseq
  %v1004 = vshrl.u32 %v1003, 7
  %v1005 = vsub.s32 %v1002, %v1004
  %v1006 = vrot.slane %v992, %v1005
  %v1007 = vcombine.high %v999, %v999
  %v1008 = vcombine.high %v1006, %v1006
  %v1010 = vunpack.c.l.s4 1966171168
  %v1011 = vunpack.c.0.s8 %v1010
  %v1012 = vlaneseq
  %v1013 = vshrl.u32 %v1012, 7
  %v1014 = vsub.s32 %v1011, %v1013
  %v1015 = vrot.slane %v1006, %v1014
  %v1017 = vunpack.c.l.s4 1966171168
  %v1018 = vunpack.c.0.s8 %v1017
  %v1019 = vlaneseq
  %v1020 = vshrl.u32 %v1019, 7
  %v1021 = vsub.s32 %v1018, %v1020
  %v1022 = vrot.slane %v1007, %v1021
  %v1024 = vunpack.c.l.s4 1966171168
  %v1025 = vunpack.c.0.s8 %v1024
  %v1026 = vlaneseq
  %v1027 = vshrl.u32 %v1026, 7
  %v1028 = vsub.s32 %v1025, %v1027
  %v1029 = vrot.slane %v1008, %v1028
  %v1030 = vcombine.high %v1022, %v1022
  %v1031 = vlaneseq
  %v1032 = vshrl.u32 %v1031, 7
  %v1033 = vsub.s32 0, %v1032
  %v1034 = vrot.slane %v1030, %v1033
  %v1035 = vlaneseq
  %v1036 = vshrl.u32 %v1035, 7
  %v1037 = vsub.s32 0, %v1036
  %v1038 = vrot.slane %v1015, %v1037
  %v1039 = vlaneseq
  %v1040 = vshrl.u32 %v1039, 7
  %v1041 = vsub.s32 0, %v1040
  %v1042 = vrot.slane %v1029, %v1041
  %v1046 = vadd.f32 %v964, %v1034
  %v1047 = vadd.f32 %v968, %v1034
  %v1048 = vadd.f32 %v975, %v1038
  %v1049 = vadd.f32 %v979, %v1038
  %v1050 = vadd.f32 %v986, %v1042
  %v1051 = vadd.f32 %v990, %v1042
  %vm1052 = vcmp.ge.f32.partialorder %v1046, 0.0
  %vm1053 = vcmp.ge.f32.partialorder %v1047, 0.0
  %vm1054 = vcmp.ge.f32.partialorder %v1048, 0.0
  %vm1055 = vcmp.ge.f32.partialorder %v1049, 0.0
  %vm1056 = vcmp.ge.f32.partialorder %v1050, 0.0
  %vm1057 = vcmp.ge.f32.partialorder %v1051, 0.0
  %v1058 = vmul.f32 %v1046, 0.2
  %v1059 = vmul.f32 %v1047, 0.2
  %v1060 = vmul.f32 %v1048, 0.2
  %v1061 = vmul.f32 %v1049, 0.2
  %v1062 = vmul.f32 %v1050, 0.2
  %v1063 = vmul.f32 %v1051, 0.2
  %v1064 = vsel %vm1052, %v1046, %v1058
  %v1065 = vsel %vm1053, %v1047, %v1059
  %v1066 = vsel %vm1054, %v1048, %v1060
  %v1067 = vsel %vm1055, %v1049, %v1061
  %v1068 = vsel %vm1056, %v1050, %v1062
  %v1069 = vsel %vm1057, %v1051, %v1063
  %v1070 = vadd.f32 %v1064, %v39
  %v1071 = vadd.f32 %v1065, %v40
  %v1072 = vadd.f32 %v1066, %v39
  %v1073 = vadd.f32 %v1067, %v40
  %v1074 = vadd.f32 %v1068, %v39
  %v1075 = vadd.f32 %v1069, %v40
  %v1076 = vsel %vm47, %v1070, -inf
  %1077 = vmax.xlane.f32.xlu0 %v1076
  %v1078 = vpop.xlane.xlu0 %1077
  %v1079 = vsel %vm47, %v1071, -inf
  %1080 = vmax.xlane.f32.xlu0 %v1079
  %v1081 = vpop.xlane.xlu0 %1080
  %v1082 = vsel %vm47, %v1072, -inf
  %1083 = vmax.xlane.f32.xlu0 %v1082
  %v1084 = vpop.xlane.xlu0 %1083
  %v1085 = vsel %vm47, %v1073, -inf
  %1086 = vmax.xlane.f32.xlu0 %v1085
  %v1087 = vpop.xlane.xlu0 %1086
  %v1088 = vsel %vm47, %v1074, -inf
  %1089 = vmax.xlane.f32.xlu0 %v1088
  %v1090 = vpop.xlane.xlu0 %1089
  %v1091 = vsel %vm47, %v1075, -inf
  %1092 = vmax.xlane.f32.xlu0 %v1091
  %v1093 = vpop.xlane.xlu0 %1092
  %v1094 = vsub.f32 %v1070, %v1078
  %v1095 = vsub.f32 %v1071, %v1081
  %v1096 = vsub.f32 %v1072, %v1084
  %v1097 = vsub.f32 %v1073, %v1087
  %v1098 = vsub.f32 %v1074, %v1090
  %v1099 = vsub.f32 %v1075, %v1093
  %v1100 = vmul.f32 %v1094, 1.442695
  %v1101 = vpow.pop %v1100
  %v1102 = vmul.f32 %v1095, 1.442695
  %v1103 = vpow.pop %v1102
  %v1104 = vmul.f32 %v1096, 1.442695
  %v1105 = vpow.pop %v1104
  %v1106 = vmul.f32 %v1097, 1.442695
  %v1107 = vpow.pop %v1106
  %v1108 = vmul.f32 %v1098, 1.442695
  %v1109 = vpow.pop %v1108
  %v1110 = vmul.f32 %v1099, 1.442695
  %v1111 = vpow.pop %v1110
  %v1112 = vsel %vm47, %v1101, 0.0
  %1113 = vadd.xlane.f32.xlu0 %v1112
  %v1114 = vpop.xlane.xlu0 %1113
  %v1115 = vsel %vm47, %v1103, 0.0
  %1116 = vadd.xlane.f32.xlu0 %v1115
  %v1117 = vpop.xlane.xlu0 %1116
  %v1118 = vsel %vm47, %v1105, 0.0
  %1119 = vadd.xlane.f32.xlu0 %v1118
  %v1120 = vpop.xlane.xlu0 %1119
  %v1121 = vsel %vm47, %v1107, 0.0
  %1122 = vadd.xlane.f32.xlu0 %v1121
  %v1123 = vpop.xlane.xlu0 %1122
  %v1124 = vsel %vm47, %v1109, 0.0
  %1125 = vadd.xlane.f32.xlu0 %v1124
  %v1126 = vpop.xlane.xlu0 %1125
  %v1127 = vsel %vm47, %v1111, 0.0
  %1128 = vadd.xlane.f32.xlu0 %v1127
  %v1129 = vpop.xlane.xlu0 %1128
  %v1130 = vrcp.pop %v1114
  %v1131 = vrcp.pop %v1117
  %v1132 = vrcp.pop %v1120
  %v1133 = vrcp.pop %v1123
  %v1134 = vrcp.pop %v1126
  %v1135 = vrcp.pop %v1129
  %v1136 = vmul.f32 %v1101, %v1130
  %v1137 = vmul.f32 %v1103, %v1131
  %v1138 = vmul.f32 %v1105, %v1132
  %v1139 = vmul.f32 %v1107, %v1133
  %v1140 = vmul.f32 %v1109, %v1134
  %v1141 = vmul.f32 %v1111, %v1135
  %v1143 = vsel %vm47, %v1136, 0
  %v1146 = vsel %vm47, %v1137, 0
  %v1149 = vsel %vm47, %v1138, 0
  %v1152 = vsel %vm47, %v1139, 0
  %v1155 = vsel %vm47, %v1140, 0
  %v1158 = vsel %vm47, %v1141, 0
  %1160 = vmatprep.subr.mxu0 0.0
  %1161 = vmatpush1.msra.mxu0 %v869
  %1162 = vmatprep.subr.mxu0 0.0
  %1163 = vmatpush1.msra.mxu0 %v874
  %1164 = vmatprep.subr.mxu0 0.0
  %1165 = vmatpush1.msra.mxu0 0.0
  %1166 = vmatprep.subr.mxu0 0.0
  %1167 = vmatpush1.msra.mxu0 0.0
  %1168 = vmatprep.subr.mxu0 0.0
  %1169 = vmatpush1.msra.mxu0 0.0
  %1170 = vmatprep.subr.mxu0 0.0
  %1171 = vmatpush1.msra.mxu0 0.0
  %1172 = vmatprep.subr.mxu0 0.0
  %1173 = vmatpush1.msra.mxu0 0.0
  %1174 = vmatprep.subr.mxu0 0.0
  %1175 = vmatpush1.msra.mxu0 0.0
  %1176 = vmatprep.subr.mxu0 0.0
  %1177 = vmatpush1.msra.mxu0 0.0
  %1178 = vmatprep.subr.mxu0 0.0
  %1179 = vmatpush1.msra.mxu0 0.0
  %1180 = vmatprep.subr.mxu0 0.0
  %1181 = vmatpush1.msra.mxu0 0.0
  %1182 = vmatprep.subr.mxu0 0.0
  %1183 = vmatpush1.msra.mxu0 0.0
  %1184 = vmatprep.subr.mxu0 0.0
  %1185 = vmatpush1.msra.mxu0 0.0
  %1186 = vmatprep.subr.mxu0 0.0
  %1187 = vmatpush1.msra.mxu0 0.0
  %1188 = vmatprep.subr.mxu0 0.0
  %1189 = vmatpush1.msra.mxu0 0.0
  %1190 = vmatprep.subr.mxu0 0.0
  %1191 = vmatpush1.msra.mxu0 0.0
  %1192 = vmatprep.subr.mxu0 0.0
  %1193 = vmatpush1.msra.mxu0 0.0
  %1194 = vmatprep.subr.mxu0 0.0
  %1195 = vmatpush1.msra.mxu0 0.0
  %1196 = vmatprep.subr.mxu0 0.0
  %1197 = vmatpush1.msra.mxu0 0.0
  %1198 = vmatprep.subr.mxu0 0.0
  %1199 = vmatpush1.msra.mxu0 0.0
  %1200 = vmatprep.subr.mxu0 0.0
  %1201 = vmatpush1.msra.mxu0 0.0
  %1202 = vmatprep.subr.mxu0 0.0
  %1203 = vmatpush1.msra.mxu0 0.0
  %1204 = vmatprep.subr.mxu0 0.0
  %1205 = vmatpush1.msra.mxu0 0.0
  %1206 = vmatprep.subr.mxu0 0.0
  %1207 = vmatpush1.msra.mxu0 0.0
  %1208 = vmatprep.subr.mxu0 0.0
  %1209 = vmatpush1.msra.mxu0 0.0
  %1210 = vmatprep.subr.mxu0 0.0
  %1211 = vmatpush1.msra.mxu0 0.0
  %1212 = vmatprep.subr.mxu0 0.0
  %1213 = vmatpush1.msra.mxu0 0.0
  %1214 = vmatprep.subr.mxu0 0.0
  %1215 = vmatpush1.msra.mxu0 0.0
  %1216 = vmatprep.subr.mxu0 0.0
  %1217 = vmatpush1.msra.mxu0 0.0
  %1218 = vmatprep.subr.mxu0 0.0
  %1219 = vmatpush1.msra.mxu0 0.0
  %1220 = vmatprep.subr.mxu0 0.0
  %1221 = vmatpush1.msra.mxu0 0.0
  %1222 = vmatprep.subr.mxu0 0.0
  %1223 = vmatpush1.msra.mxu0 0.0
  %1224 = vmatprep.mubr.f32.mxu0 0.0
  %1225 = vmatmul.mubr.f32.gmra.mrb[0].mxu0 %v1143
  %v1226 = vpop.f32.mrb[0].mxu0
  %v1227 = vadd.f32 0.0, %v1226
  %v1228 = vpop.f32.mrb[0].mxu0
  %1229 = vmatprep.mubr.f32.mxu0 0.0
  %1230 = vmatmul.mubr.f32.gmra.mrb[0].mxu0 %v1146
  %v1231 = vpop.f32.mrb[0].mxu0
  %v1232 = vadd.f32 0.0, %v1231
  %v1233 = vpop.f32.mrb[0].mxu0
  %1234 = vmatprep.mubr.f32.mxu0 0.0
  %1235 = vmatmul.mubr.f32.gmra.mrb[0].mxu0 %v1149
  %v1236 = vpop.f32.mrb[0].mxu0
  %v1237 = vadd.f32 0.0, %v1236
  %v1238 = vpop.f32.mrb[0].mxu0
  %1239 = vmatprep.mubr.f32.mxu0 0.0
  %1240 = vmatmul.mubr.f32.gmra.mrb[0].mxu0 %v1152
  %v1241 = vpop.f32.mrb[0].mxu0
  %v1242 = vadd.f32 0.0, %v1241
  %v1243 = vpop.f32.mrb[0].mxu0
  %1244 = vmatprep.mubr.f32.mxu0 0.0
  %1245 = vmatmul.mubr.f32.gmra.mrb[0].mxu0 %v1155
  %v1246 = vpop.f32.mrb[0].mxu0
  %v1247 = vadd.f32 0.0, %v1246
  %v1248 = vpop.f32.mrb[0].mxu0
  %1249 = vmatprep.mubr.f32.mxu0 0.0
  %1250 = vmatmul.mubr.f32.gmra.mrb[0].mxu0 %v1158
  %v1251 = vpop.f32.mrb[0].mxu0
  %v1252 = vadd.f32 0.0, %v1251
  %v1253 = vpop.f32.mrb[0].mxu0
  %1254 = vdwg.mxu0
  %1257 = vrot.lane.b32.xlu0 %v1237, 126
  %v1258 = vpop.permute.xlu0 %1257
  %1259 = vrot.lane.b32.xlu0 %v1242, 126
  %v1260 = vpop.permute.xlu0 %1259
  %v1263 = vadd.f32 %v1227, %v1258
  %v1264 = vadd.f32 %v1232, %v1260
  %1267 = vrot.lane.b32.xlu0 %v1247, 124
  %v1268 = vpop.permute.xlu0 %1267
  %1269 = vrot.lane.b32.xlu0 %v1252, 124
  %v1270 = vpop.permute.xlu0 %1269
  %v1273 = vadd.f32 %v1263, %v1268
  %v1274 = vadd.f32 %v1264, %v1270
  %v1275 = vmul.f32 %v1273, 0.33333334
  %v1276 = vmul.f32 %v1274, 0.33333334
  %v1277 = vld [vmem:[%s9] sm:$0x1]
  %v1279 = vlaneseq
  %v1280 = vshrl.u32 %v1279, 7
  %v1281 = vsub.s32 0, %v1280
  %v1282 = vrot.slane %v1277, %v1281
  %v1284 = vadd.f32 %v1275, %v1282
  %v1285 = vadd.f32 %v1276, %v1282
  %vm1286 = vcmask 15360
  %v1287 = vsel %vm1286, %v1284, -inf
  %1288 = vmax.xlane.f32.xlu0 %v1287
  %v1289 = vpop.xlane.xlu0 %1288
  %v1290 = vsel %vm1286, %v1285, -inf
  %1291 = vmax.xlane.f32.xlu0 %v1290
  %v1292 = vpop.xlane.xlu0 %1291
  %v1293 = vsub.f32 %v1284, %v1289
  %v1294 = vsub.f32 %v1285, %v1292
  %v1295 = vmul.f32 %v1293, 1.442695
  %v1296 = vpow.pop %v1295
  %v1297 = vmul.f32 %v1294, 1.442695
  %v1298 = vpow.pop %v1297
  %v1299 = vsel %vm1286, %v1296, 0.0
  %1300 = vadd.xlane.f32.xlu0 %v1299
  %v1301 = vpop.xlane.xlu0 %1300
  %v1302 = vsel %vm1286, %v1298, 0.0
  %1303 = vadd.xlane.f32.xlu0 %v1302
  %v1304 = vpop.xlane.xlu0 %1303
  %v1305 = vrcp.pop %v1301
  %v1306 = vmul.f32 %v1296, %v1305
  %v1307 = vrcp.pop %v1304
  %v1308 = vmul.f32 %v1298, %v1307
  %1309 = vst.msk [vmem:[%s10] sm:$0xff] %vm1286, %v1306
  %1310 = vst.msk [vmem:[%s10 + $0x8] sm:$0xff] %vm1286, %v1308
  // Predicated region
  $region42: #{gat_forward.1} parent=0 // pred_check
    _
  $region43: #{gat_forward.1} parent=0 // pred_check_branch
    %1312 = sbr.rel (0) target = $region45
  $region44: #{gat_forward.1} parent=0 // pred_region
    _
  $region45: #{gat_forward.1} parent=0 // pred_fallthru
    _
  // Predicated region
  $region46: #{gat_forward.1} parent=0 // pred_check
    _
  $region47: #{gat_forward.1} parent=0 // pred_check_branch
    %1314 = sbr.rel (0) target = $region49
  $region48: #{gat_forward.1} parent=0 // pred_region
    _
  $region49: #{gat_forward.1} parent=0 // pred_fallthru
    _

</llo_original>
